<compile_context>
chip_gen: v5e
topology: v5e:2x2
jax: 0.10.0
libtpu: 0.0.40
codegen_flags: <defaults>
</compile_context>

<pallas_src>
import jax
import jax.numpy as jnp
from jax.experimental import pallas as pl
from jax.experimental.pallas import tpu as pltpu

IN_FEATURES = 28 * 28  # 784
OUT_FEATURES = 10


def _linear_relu_kernel(x_ref, w_ref, b_ref, o_ref):
    # x_ref: [TB, K] bf16   w_ref: [K, N] bf16   b_ref: [1, N] f32
    # o_ref: [TB, N] f32
    acc = jnp.dot(x_ref[...], w_ref[...], preferred_element_type=jnp.float32)
    acc = acc + b_ref[...]                       # bias broadcast over rows (f32)
    o_ref[...] = jnp.maximum(acc, 0.0).astype(o_ref.dtype)


def _round_up(x, m):
    return ((x + m - 1) // m) * m


def simple_sample_convnet_forward(x, w, b, *, batch_tile=2048,
                                  tiling_threshold=512):
    """Forward pass of SimpleSampleConvNet.

    x: [B, 1, 28, 28] (or any shape whose trailing dims flatten to 784)
    w: [784, 10]  (transpose of PyTorch fc1.weight)
    b: [10]
    returns: [B, 10] float32
    """
    x2d = jnp.reshape(x, (-1, IN_FEATURES)).astype(jnp.bfloat16)
    B, K = x2d.shape
    N = w.shape[1]
    w_bf = w.astype(jnp.bfloat16)
    b2d = jnp.reshape(b, (1, N)).astype(jnp.float32)

    # bf16 reads for x/w, f32 bias read + f32 output write.
    cost = pl.CostEstimate(
        flops=2 * B * K * N,
        transcendentals=0,
        bytes_accessed=2 * (B * K + K * N) + 4 * (N + B * N),
    )

    if B < tiling_threshold:
        # Tiny batch: single grid step; latency dominated, nothing to pipeline.
        grid = (1,)
        x_spec = pl.BlockSpec((B, K), lambda i: (0, 0))
        o_spec = pl.BlockSpec((B, N), lambda i: (0, 0))
        compiler_params = pltpu.CompilerParams(
            dimension_semantics=("arbitrary",))
    else:
        # Batch-tiled: x / out double-buffered, w / b stay VMEM-resident.
        tb = min(batch_tile, B)
        grid = (pl.cdiv(B, tb),)
        x_spec = pl.BlockSpec((tb, K), lambda i: (i, 0))
        o_spec = pl.BlockSpec((tb, N), lambda i: (i, 0))

        # Explicit scoped-VMEM budget from padded tile sizes (lane pad to 128;
        # double-buffered x and out, resident w/b), with slack.  Needed on
        # v5e (16 MiB scoped default); capped under v7x's 64 MiB physical.
        k_pad = _round_up(K, 128)
        n_pad = _round_up(N, 128)
        vmem_est = (2 * tb * k_pad * 2        # x double buffer (bf16)
                    + 2 * tb * n_pad * 4      # out double buffer (f32)
                    + k_pad * n_pad * 2       # resident weight (bf16)
                    + 8 * n_pad * 4)          # resident bias (f32)
        vmem_limit = min(max(int(1.5 * vmem_est) + (2 << 20), 16 << 20),
                         48 << 20)
        compiler_params = pltpu.CompilerParams(
            dimension_semantics=("parallel",),
            vmem_limit_bytes=vmem_limit)

    out = pl.pallas_call(
        _linear_relu_kernel,
        out_shape=jax.ShapeDtypeStruct((B, N), jnp.float32),
        grid=grid,
        in_specs=[
            x_spec,
            pl.BlockSpec((K, N), lambda i: (0, 0)),   # full weight, resident
            pl.BlockSpec((1, N), lambda i: (0, 0)),   # full bias, resident
        ],
        out_specs=o_spec,
        compiler_params=compiler_params,
        cost_estimate=cost,
    )(x2d, w_bf, b2d)
    return out


def _reference_forward(x, w, b):
    """Reference matching the kernel's numerics: bf16-rounded inputs,
    f32 accumulation / bias / ReLU."""
    x2d = x.reshape(-1, IN_FEATURES).astype(jnp.bfloat16).astype(jnp.float32)
    w32 = w.astype(jnp.bfloat16).astype(jnp.float32)
    return jnp.maximum(x2d @ w32 + b.astype(jnp.float32), 0.0)


if __name__ == "__main__":
    key = jax.random.PRNGKey(0)
    k_x, k_w, k_b, k_x2, k_x3 = jax.random.split(key, 5)

    # Deterministic parameter init (shapes from nn.Linear(784, 10)).
    # Stored as [in, out] = [784, 10]; bias [10].
    bound = 1.0 / jnp.sqrt(float(IN_FEATURES))
    w = jax.random.uniform(k_w, (IN_FEATURES, OUT_FEATURES),
                           minval=-bound, maxval=bound, dtype=jnp.float32)
    b = jax.random.uniform(k_b, (OUT_FEATURES,),
                           minval=-bound, maxval=bound, dtype=jnp.float32)

    tol = dict(atol=1e-3, rtol=1e-3)  # bf16 inputs, f32 accumulation

    # 1) Tiny-batch inference path (single grid step), NCHW like PyTorch.
    B = 2
    x = jax.random.normal(k_x, (B, 1, 28, 28), dtype=jnp.float32)
    out = jax.block_until_ready(simple_sample_convnet_forward(x, w, b))
    ref = _reference_forward(x, w, b)
    assert out.shape == (B, OUT_FEATURES), out.shape
    assert jnp.allclose(out, ref, **tol), "mismatch (B=2)"

    # 2) Batch-tiled path (grid > 1, batch axis parallel), evenly divisible.
    B2, TB2 = 384, 128
    x2 = jax.random.normal(k_x2, (B2, 1, 28, 28), dtype=jnp.float32)
    out2 = jax.block_until_ready(
        simple_sample_convnet_forward(x2, w, b,
                                      batch_tile=TB2, tiling_threshold=256))
    ref2 = _reference_forward(x2, w, b)
    assert out2.shape == (B2, OUT_FEATURES), out2.shape
    assert jnp.allclose(out2, ref2, **tol), "mismatch (tiled)"

    # 3) Ragged batch (B not divisible by batch_tile): exercises the masked
    #    partial last block of the tiled path.
    B3, TB3 = 1000, 256
    x3 = jax.random.normal(k_x3, (B3, 1, 28, 28), dtype=jnp.float32)
    out3 = jax.block_until_ready(
        simple_sample_convnet_forward(x3, w, b,
                                      batch_tile=TB3, tiling_threshold=256))
    ref3 = _reference_forward(x3, w, b)
    assert out3.shape == (B3, OUT_FEATURES), out3.shape
    assert jnp.allclose(out3, ref3, **tol), "mismatch (ragged tail)"

    print("KERNEL_OK")
</pallas_src>

<mosaic_0001>
module attributes {stable_mosaic.version = 11 : i64} {
  func.func @_linear_relu_kernel(%arg0: i32, %arg1: memref<2x784xbf16, #tpu.memory_space<vmem>>, %arg2: memref<784x10xbf16, #tpu.memory_space<vmem>>, %arg3: memref<1x10xf32, #tpu.memory_space<vmem>>, %arg4: memref<2x10xf32, #tpu.memory_space<vmem>>) attributes {dimension_semantics = [#tpu.dimension_semantics<arbitrary>], iteration_bounds = array<i64: 1>, scalar_prefetch = 0 : i64, scratch_operands = 0 : i64, tpu.core_type = #tpu.core_type<tc>, window_params = [{pipeline_mode = #tpu.pipeline_mode<synchronous>, transform_indices = @transform_0, window_bounds = array<i64: 2, 784>}, {pipeline_mode = #tpu.pipeline_mode<synchronous>, transform_indices = @transform_1, window_bounds = array<i64: 784, 10>}, {pipeline_mode = #tpu.pipeline_mode<synchronous>, transform_indices = @transform_2, window_bounds = array<i64: 1, 10>}, {pipeline_mode = #tpu.pipeline_mode<synchronous>, transform_indices = @transform_3, window_bounds = array<i64: 2, 10>}]} {
    %c0 = arith.constant 0 : index
    %c0_0 = arith.constant 0 : index
    %0 = vector.load %arg1[%c0, %c0_0] : memref<2x784xbf16, #tpu.memory_space<vmem>>, vector<2x784xbf16>
    %c0_1 = arith.constant 0 : index
    %c0_2 = arith.constant 0 : index
    %1 = vector.load %arg2[%c0_1, %c0_2] : memref<784x10xbf16, #tpu.memory_space<vmem>>, vector<784x10xbf16>
    %cst = arith.constant dense<0.000000e+00> : vector<2x10xf32>
    %2 = tpu.matmul %0, %1, %cst {dimension_numbers = #tpu.dot_dimension_numbers<[1], [0], [0], [1], [0, 0, 1, 1], [], []>} : vector<2x784xbf16>, vector<784x10xbf16>, vector<2x10xf32> -> vector<2x10xf32>
    %c0_3 = arith.constant 0 : index
    %c0_4 = arith.constant 0 : index
    %3 = vector.load %arg3[%c0_3, %c0_4] : memref<1x10xf32, #tpu.memory_space<vmem>>, vector<1x10xf32>
    %4 = vector.broadcast %3 : vector<1x10xf32> to vector<2x10xf32>
    %5 = arith.addf %2, %4 : vector<2x10xf32>
    %cst_5 = arith.constant 0.000000e+00 : f32
    %6 = vector.broadcast %cst_5 : f32 to vector<2x10xf32>
    %7 = arith.maximumf %5, %6 : vector<2x10xf32>
    %c0_6 = arith.constant 0 : index
    %c0_7 = arith.constant 0 : index
    %8 = vector.load %arg4[%c0_6, %c0_7] : memref<2x10xf32, #tpu.memory_space<vmem>>, vector<2x10xf32>
    tpu.vector_store %arg4[%c0_6, %c0_7], %7 {strides = array<i32>} : memref<2x10xf32, #tpu.memory_space<vmem>>, vector<2x10xf32>,
    return
  }
  func.func @transform_0(%arg0: i32) -> (i32, i32) {
    %c0_i32 = arith.constant 0 : i32
    %c0_i32_0 = arith.constant 0 : i32
    %c0_i32_1 = arith.constant 0 : i32
    return %c0_i32, %c0_i32_0 : i32, i32
  }
  func.func @transform_1(%arg0: i32) -> (i32, i32) {
    %c0_i32 = arith.constant 0 : i32
    %c0_i32_0 = arith.constant 0 : i32
    %c0_i32_1 = arith.constant 0 : i32
    return %c0_i32, %c0_i32_0 : i32, i32
  }
  func.func @transform_2(%arg0: i32) -> (i32, i32) {
    %c0_i32 = arith.constant 0 : i32
    %c0_i32_0 = arith.constant 0 : i32
    %c0_i32_1 = arith.constant 0 : i32
    return %c0_i32, %c0_i32_0 : i32, i32
  }
  func.func @transform_3(%arg0: i32) -> (i32, i32) {
    %c0_i32 = arith.constant 0 : i32
    %c0_i32_0 = arith.constant 0 : i32
    %c0_i32_1 = arith.constant 0 : i32
    return %c0_i32, %c0_i32_0 : i32, i32
  }
}

</mosaic_0001>

<llo_original>
// kernel: tpu_custom_call.1
$region0: #{tpu_custom_call.1}
  #allocation0 [shape = 'u32[]', space=smem, size = 0x4, offset = 0x4, fixed_abs, tag = 'smem constant byte address 0x4 - core index']
  #allocation1 [shape = 'u32[72,128]{1,0:T(1,128)}', space=vmem, size = 0x9000, scoped, tag = 'internal scratch']
  %s0 = inlined_call_operand.vmem [shape: bf16[2,784], index: 0, kind: input, shape index: {}]
  %s1 = inlined_call_operand.vmem [shape: bf16[784,10], index: 1, kind: input, shape index: {}]
  %s2 = inlined_call_operand.vmem [shape: f32[1,10], index: 2, kind: input, shape index: {}]
  %s3 = inlined_call_operand.hbm [shape: f32[2,10], index: 3, kind: output, shape index: {}]
  %s4 = sld [smem:[#allocation0]]
  $region22: #{tpu_custom_call.1} parent=0
    _
  %s6 = ssub.s32 1, %s4
  %s7 = scalar_select 0, %s6, %s4
  $region1: #{tpu_custom_call.1} parent=0
    #allocation2 [shape = 'u8[1024]{0}', space=vmem, size = 0x400, scoped, tag = 'output window, operand 0, single buffered']
    #allocation3 [shape = 's32[1]{0}', space=sflag, size = 0x4, scoped, tag = 'scoped memory for tpu_custom_call.1']
    %8 = vsyncpa [#allocation3], 0
    // Predicated region
    $region2: #{tpu_custom_call.1} parent=1 // pred_check
      _
    $region3: #{tpu_custom_call.1} parent=1 // pred_check_branch
      %10 = sbr.rel (0) target = $region5
    $region4: #{tpu_custom_call.1} parent=1 // pred_region
      _
    $region5: #{tpu_custom_call.1} parent=1 // pred_fallthru
      _
    // Predicated region
    $region6: #{tpu_custom_call.1} parent=1 // pred_check
      _
    $region7: #{tpu_custom_call.1} parent=1 // pred_check_branch
      %12 = sbr.rel (0) target = $region9
    $region8: #{tpu_custom_call.1} parent=1 // pred_region
      _
    $region9: #{tpu_custom_call.1} parent=1 // pred_fallthru
      _
    // Predicated region
    $region10: #{tpu_custom_call.1} parent=1 // pred_check
      _
    $region11: #{tpu_custom_call.1} parent=1 // pred_check_branch
      %14 = sbr.rel (0) target = $region13
    $region12: #{tpu_custom_call.1} parent=1 // pred_region
      _
    $region13: #{tpu_custom_call.1} parent=1 // pred_fallthru
      _
    %v16 = vld [vmem:[%s0] sm:$0x7f]
    %v17 = vld [vmem:[%s1] sm:$0xf]
    %v18 = vld [vmem:[%s1 + $0x4] sm:$0xf]
    %v19 = vld [vmem:[%s1 + $0x8] sm:$0xf]
    %v20 = vld [vmem:[%s1 + $0xc] sm:$0xf]
    %v21 = vld [vmem:[%s1 + $0x10] sm:$0xf]
    %v22 = vld [vmem:[%s1 + $0x14] sm:$0xf]
    %v23 = vld [vmem:[%s1 + $0x18] sm:$0xf]
    %v24 = vld [vmem:[%s1 + $0x1c] sm:$0xf]
    %v25 = vld [vmem:[%s1 + $0x20] sm:$0xf]
    %v26 = vld [vmem:[%s1 + $0x24] sm:$0xf]
    %v27 = vld [vmem:[%s1 + $0x28] sm:$0xf]
    %v28 = vld [vmem:[%s1 + $0x2c] sm:$0xf]
    %v29 = vld [vmem:[%s1 + $0x30] sm:$0xf]
    %v30 = vld [vmem:[%s1 + $0x34] sm:$0xf]
    %v31 = vld [vmem:[%s1 + $0x38] sm:$0xf]
    %v32 = vld [vmem:[%s1 + $0x3c] sm:$0xf]
    %v33 = vld [vmem:[%s1 + $0x40] sm:$0xf]
    %v34 = vld [vmem:[%s1 + $0x44] sm:$0xf]
    %v35 = vld [vmem:[%s1 + $0x48] sm:$0xf]
    %v36 = vld [vmem:[%s1 + $0x4c] sm:$0xf]
    %v37 = vld [vmem:[%s1 + $0x50] sm:$0xf]
    %v38 = vld [vmem:[%s1 + $0x54] sm:$0xf]
    %v39 = vld [vmem:[%s1 + $0x58] sm:$0xf]
    %v40 = vld [vmem:[%s1 + $0x5c] sm:$0xf]
    %v41 = vld [vmem:[%s1 + $0x60] sm:$0xf]
    %v42 = vld [vmem:[%s1 + $0x64] sm:$0xf]
    %v43 = vld [vmem:[%s1 + $0x68] sm:$0xf]
    %v44 = vld [vmem:[%s1 + $0x6c] sm:$0xf]
    %v45 = vld [vmem:[%s1 + $0x70] sm:$0xf]
    %v46 = vld [vmem:[%s1 + $0x74] sm:$0xf]
    %v47 = vld [vmem:[%s1 + $0x78] sm:$0xf]
    %v48 = vld [vmem:[%s1 + $0x7c] sm:$0xf]
    %v49 = vld [vmem:[%s1 + $0x80] sm:$0xf]
    %v50 = vld [vmem:[%s1 + $0x84] sm:$0xf]
    %v51 = vld [vmem:[%s1 + $0x88] sm:$0xf]
    %v52 = vld [vmem:[%s1 + $0x8c] sm:$0xf]
    %v53 = vld [vmem:[%s1 + $0x90] sm:$0xf]
    %v54 = vld [vmem:[%s1 + $0x94] sm:$0xf]
    %v55 = vld [vmem:[%s1 + $0x98] sm:$0xf]
    %v56 = vld [vmem:[%s1 + $0x9c] sm:$0xf]
    %v57 = vld [vmem:[%s1 + $0xa0] sm:$0xf]
    %v58 = vld [vmem:[%s1 + $0xa4] sm:$0xf]
    %v59 = vld [vmem:[%s1 + $0xa8] sm:$0xf]
    %v60 = vld [vmem:[%s1 + $0xac] sm:$0xf]
    %v61 = vld [vmem:[%s1 + $0xb0] sm:$0xf]
    %v62 = vld [vmem:[%s1 + $0xb4] sm:$0xf]
    %v63 = vld [vmem:[%s1 + $0xb8] sm:$0xf]
    %v64 = vld [vmem:[%s1 + $0xbc] sm:$0xf]
    %v65 = vld [vmem:[%s1 + $0xc0] sm:$0xf]
    %v66 = vld [vmem:[%s1 + $0xc4] sm:$0xf]
    %v67 = vld [vmem:[%s1 + $0xc8] sm:$0xf]
    %v68 = vld [vmem:[%s1 + $0xcc] sm:$0xf]
    %v69 = vld [vmem:[%s1 + $0xd0] sm:$0xf]
    %v70 = vld [vmem:[%s1 + $0xd4] sm:$0xf]
    %v71 = vld [vmem:[%s1 + $0xd8] sm:$0xf]
    %v72 = vld [vmem:[%s1 + $0xdc] sm:$0xf]
    %v73 = vld [vmem:[%s1 + $0xe0] sm:$0xf]
    %v74 = vld [vmem:[%s1 + $0xe4] sm:$0xf]
    %v75 = vld [vmem:[%s1 + $0xe8] sm:$0xf]
    %v76 = vld [vmem:[%s1 + $0xec] sm:$0xf]
    %v77 = vld [vmem:[%s1 + $0xf0] sm:$0xf]
    %v78 = vld [vmem:[%s1 + $0xf4] sm:$0xf]
    %v79 = vld [vmem:[%s1 + $0xf8] sm:$0xf]
    %v80 = vld [vmem:[%s1 + $0xfc] sm:$0xf]
    %v81 = vld [vmem:[%s1 + $0x100] sm:$0xf]
    %v82 = vld [vmem:[%s1 + $0x104] sm:$0xf]
    %v83 = vld [vmem:[%s1 + $0x108] sm:$0xf]
    %v84 = vld [vmem:[%s1 + $0x10c] sm:$0xf]
    %v85 = vld [vmem:[%s1 + $0x110] sm:$0xf]
    %v86 = vld [vmem:[%s1 + $0x114] sm:$0xf]
    %v87 = vld [vmem:[%s1 + $0x118] sm:$0xf]
    %v88 = vld [vmem:[%s1 + $0x11c] sm:$0xf]
    %v89 = vld [vmem:[%s1 + $0x120] sm:$0xf]
    %v90 = vld [vmem:[%s1 + $0x124] sm:$0xf]
    %v91 = vld [vmem:[%s1 + $0x128] sm:$0xf]
    %v92 = vld [vmem:[%s1 + $0x12c] sm:$0xf]
    %v93 = vld [vmem:[%s1 + $0x130] sm:$0xf]
    %v94 = vld [vmem:[%s1 + $0x134] sm:$0xf]
    %v95 = vld [vmem:[%s1 + $0x138] sm:$0xf]
    %v96 = vld [vmem:[%s1 + $0x13c] sm:$0xf]
    %v97 = vld [vmem:[%s1 + $0x140] sm:$0xf]
    %v98 = vld [vmem:[%s1 + $0x144] sm:$0xf]
    %v99 = vld [vmem:[%s1 + $0x148] sm:$0xf]
    %v100 = vld [vmem:[%s1 + $0x14c] sm:$0xf]
    %v101 = vld [vmem:[%s1 + $0x150] sm:$0xf]
    %v102 = vld [vmem:[%s1 + $0x154] sm:$0xf]
    %v103 = vld [vmem:[%s1 + $0x158] sm:$0xf]
    %v104 = vld [vmem:[%s1 + $0x15c] sm:$0xf]
    %v105 = vld [vmem:[%s1 + $0x160] sm:$0xf]
    %v106 = vld [vmem:[%s1 + $0x164] sm:$0xf]
    %v107 = vld [vmem:[%s1 + $0x168] sm:$0xf]
    %v108 = vld [vmem:[%s1 + $0x16c] sm:$0xf]
    %v109 = vld [vmem:[%s1 + $0x170] sm:$0xf]
    %v110 = vld [vmem:[%s1 + $0x174] sm:$0xf]
    %v111 = vld [vmem:[%s1 + $0x178] sm:$0xf]
    %v112 = vld [vmem:[%s1 + $0x17c] sm:$0xf]
    %v113 = vld [vmem:[%s1 + $0x180] sm:$0xf]
    %v114 = vld [vmem:[%s1 + $0x184] sm:$0xf]
    %v115 = vld [vmem:[%s2] sm:$0x1]
    %v117 = vperm.slane %v115, 0
    %120 = vst [vmem:[#allocation1] ss:$9 sm:$0xff] %v16
    %v121 = vld [vmem:[#allocation1] sm:$0xff]
    %v122 = vld [vmem:[#allocation1 + $0x9] sm:$0xff]
    %v123 = vld [vmem:[#allocation1 + $0x12] sm:$0xff]
    %v124 = vld [vmem:[#allocation1 + $0x1b] sm:$0xff]
    %v125 = vld [vmem:[#allocation1 + $0x24] sm:$0xff]
    %v126 = vld [vmem:[#allocation1 + $0x2d] sm:$0xff]
    %v127 = vld [vmem:[#allocation1 + $0x36] sm:$0xff]
    %v232 = vunpack.c.l.b16 %v17
    %v233 = vunpack.c.l.b16 %v18
    %v234 = vunpack.c.l.b16 %v19
    %v235 = vunpack.c.l.b16 %v20
    %v236 = vunpack.c.l.b16 %v21
    %v237 = vunpack.c.l.b16 %v22
    %v238 = vunpack.c.l.b16 %v23
    %v239 = vunpack.c.l.b16 %v24
    %v240 = vunpack.c.l.b16 %v25
    %v241 = vunpack.c.l.b16 %v26
    %v242 = vunpack.c.l.b16 %v27
    %v243 = vunpack.c.l.b16 %v28
    %v244 = vunpack.c.l.b16 %v29
    %v245 = vunpack.c.l.b16 %v30
    %v246 = vunpack.c.l.b16 %v31
    %v247 = vunpack.c.l.b16 %v32
    %v248 = vunpack.c.l.b16 %v33
    %v249 = vunpack.c.l.b16 %v34
    %v250 = vunpack.c.l.b16 %v35
    %v251 = vunpack.c.l.b16 %v36
    %v252 = vunpack.c.l.b16 %v37
    %v253 = vunpack.c.l.b16 %v38
    %v254 = vunpack.c.l.b16 %v39
    %v255 = vunpack.c.l.b16 %v40
    %v256 = vunpack.c.l.b16 %v41
    %v257 = vunpack.c.l.b16 %v42
    %v258 = vunpack.c.l.b16 %v43
    %v259 = vunpack.c.l.b16 %v44
    %v260 = vunpack.c.l.b16 %v45
    %v261 = vunpack.c.l.b16 %v46
    %v262 = vunpack.c.l.b16 %v47
    %v263 = vunpack.c.l.b16 %v48
    %v264 = vunpack.c.l.b16 %v49
    %v265 = vunpack.c.l.b16 %v50
    %v266 = vunpack.c.l.b16 %v51
    %v267 = vunpack.c.l.b16 %v52
    %v268 = vunpack.c.l.b16 %v53
    %v269 = vunpack.c.l.b16 %v54
    %v270 = vunpack.c.l.b16 %v55
    %v271 = vunpack.c.l.b16 %v56
    %v272 = vunpack.c.l.b16 %v57
    %v273 = vunpack.c.l.b16 %v58
    %v274 = vunpack.c.l.b16 %v59
    %v275 = vunpack.c.l.b16 %v60
    %v276 = vunpack.c.l.b16 %v61
    %v277 = vunpack.c.l.b16 %v62
    %v278 = vunpack.c.l.b16 %v63
    %v279 = vunpack.c.l.b16 %v64
    %v280 = vunpack.c.l.b16 %v65
    %v281 = vunpack.c.l.b16 %v66
    %v282 = vunpack.c.l.b16 %v67
    %v283 = vunpack.c.l.b16 %v68
    %v284 = vunpack.c.l.b16 %v69
    %v285 = vunpack.c.l.b16 %v70
    %v286 = vunpack.c.l.b16 %v71
    %v287 = vunpack.c.l.b16 %v72
    %v288 = vunpack.c.l.b16 %v73
    %v289 = vunpack.c.l.b16 %v74
    %v290 = vunpack.c.l.b16 %v75
    %v291 = vunpack.c.l.b16 %v76
    %v292 = vunpack.c.l.b16 %v77
    %v293 = vunpack.c.l.b16 %v78
    %v294 = vunpack.c.l.b16 %v79
    %v295 = vunpack.c.l.b16 %v80
    %v296 = vunpack.c.l.b16 %v81
    %v297 = vunpack.c.l.b16 %v82
    %v298 = vunpack.c.l.b16 %v83
    %v299 = vunpack.c.l.b16 %v84
    %v300 = vunpack.c.l.b16 %v85
    %v301 = vunpack.c.l.b16 %v86
    %v302 = vunpack.c.l.b16 %v87
    %v303 = vunpack.c.l.b16 %v88
    %v304 = vunpack.c.l.b16 %v89
    %v305 = vunpack.c.l.b16 %v90
    %v306 = vunpack.c.l.b16 %v91
    %v307 = vunpack.c.l.b16 %v92
    %v308 = vunpack.c.l.b16 %v93
    %v309 = vunpack.c.l.b16 %v94
    %v310 = vunpack.c.l.b16 %v95
    %v311 = vunpack.c.l.b16 %v96
    %v312 = vunpack.c.l.b16 %v97
    %v313 = vunpack.c.l.b16 %v98
    %v314 = vunpack.c.l.b16 %v99
    %v315 = vunpack.c.l.b16 %v100
    %v316 = vunpack.c.l.b16 %v101
    %v317 = vunpack.c.l.b16 %v102
    %v318 = vunpack.c.l.b16 %v103
    %v319 = vunpack.c.l.b16 %v104
    %v320 = vunpack.c.l.b16 %v105
    %v321 = vunpack.c.l.b16 %v106
    %v322 = vunpack.c.l.b16 %v107
    %v323 = vunpack.c.l.b16 %v108
    %v324 = vunpack.c.l.b16 %v109
    %v325 = vunpack.c.l.b16 %v110
    %v326 = vunpack.c.l.b16 %v111
    %v327 = vunpack.c.l.b16 %v112
    %v328 = vunpack.c.l.b16 %v113
    %v329 = vunpack.c.l.b16 %v114
    %v330 = vpack.c.b16 %v233, %v232
    %v331 = vpack.c.b16 %v235, %v234
    %v332 = vpack.c.b16 %v237, %v236
    %v333 = vpack.c.b16 %v239, %v238
    %v334 = vpack.c.b16 %v241, %v240
    %v335 = vpack.c.b16 %v243, %v242
    %v336 = vpack.c.b16 %v245, %v244
    %v337 = vpack.c.b16 %v247, %v246
    %v338 = vpack.c.b16 %v249, %v248
    %v339 = vpack.c.b16 %v251, %v250
    %v340 = vpack.c.b16 %v253, %v252
    %v341 = vpack.c.b16 %v255, %v254
    %v342 = vpack.c.b16 %v257, %v256
    %v343 = vpack.c.b16 %v259, %v258
    %v344 = vpack.c.b16 %v261, %v260
    %v345 = vpack.c.b16 %v263, %v262
    %v346 = vpack.c.b16 %v265, %v264
    %v347 = vpack.c.b16 %v267, %v266
    %v348 = vpack.c.b16 %v269, %v268
    %v349 = vpack.c.b16 %v271, %v270
    %v350 = vpack.c.b16 %v273, %v272
    %v351 = vpack.c.b16 %v275, %v274
    %v352 = vpack.c.b16 %v277, %v276
    %v353 = vpack.c.b16 %v279, %v278
    %v354 = vpack.c.b16 %v281, %v280
    %v355 = vpack.c.b16 %v283, %v282
    %v356 = vpack.c.b16 %v285, %v284
    %v357 = vpack.c.b16 %v287, %v286
    %v358 = vpack.c.b16 %v289, %v288
    %v359 = vpack.c.b16 %v291, %v290
    %v360 = vpack.c.b16 %v293, %v292
    %v361 = vpack.c.b16 %v295, %v294
    %v362 = vpack.c.b16 %v297, %v296
    %v363 = vpack.c.b16 %v299, %v298
    %v364 = vpack.c.b16 %v301, %v300
    %v365 = vpack.c.b16 %v303, %v302
    %v366 = vpack.c.b16 %v305, %v304
    %v367 = vpack.c.b16 %v307, %v306
    %v368 = vpack.c.b16 %v309, %v308
    %v369 = vpack.c.b16 %v311, %v310
    %v370 = vpack.c.b16 %v313, %v312
    %v371 = vpack.c.b16 %v315, %v314
    %v372 = vpack.c.b16 %v317, %v316
    %v373 = vpack.c.b16 %v319, %v318
    %v374 = vpack.c.b16 %v321, %v320
    %v375 = vpack.c.b16 %v323, %v322
    %v376 = vpack.c.b16 %v325, %v324
    %v377 = vpack.c.b16 %v327, %v326
    %v378 = vpack.c.b16 %v329, %v328
    %vm428 = vcmask 130048
    %v429 = vsel %vm428, %v127, 0
    %431 = vmatpush.bf16.msra.mxu0 %v337
    %432 = vmatpush.bf16.msra.mxu0 %v336
    %433 = vmatpush.bf16.msra.mxu0 %v335
    %434 = vmatpush.bf16.msra.mxu0 %v334
    %435 = vmatpush.bf16.msra.mxu0 %v333
    %436 = vmatpush.bf16.msra.mxu0 %v332
    %437 = vmatpush.bf16.msra.mxu0 %v331
    %438 = vmatpush.bf16.msra.mxu0 %v330
    %439 = vmatmul.bf16.gmra.mxu0 %v121
    %v440 = vpop.f32.mrf.mxu0
    %v441 = vadd.f32 %v117, %v440
    %v442 = vpop.f32.mrf.mxu0
    %443 = vdwg.mxu0
    %444 = vmatpush.bf16.msra.mxu0 %v345
    %445 = vmatpush.bf16.msra.mxu0 %v344
    %446 = vmatpush.bf16.msra.mxu0 %v343
    %447 = vmatpush.bf16.msra.mxu0 %v342
    %448 = vmatpush.bf16.msra.mxu0 %v341
    %449 = vmatpush.bf16.msra.mxu0 %v340
    %450 = vmatpush.bf16.msra.mxu0 %v339
    %451 = vmatpush.bf16.msra.mxu0 %v338
    %452 = vmatmul.bf16.gmra.mxu0 %v122
    %v453 = vpop.f32.mrf.mxu0
    %v454 = vadd.f32 %v441, %v453
    %v455 = vpop.f32.mrf.mxu0
    %456 = vdwg.mxu0
    %457 = vmatpush.bf16.msra.mxu0 %v353
    %458 = vmatpush.bf16.msra.mxu0 %v352
    %459 = vmatpush.bf16.msra.mxu0 %v351
    %460 = vmatpush.bf16.msra.mxu0 %v350
    %461 = vmatpush.bf16.msra.mxu0 %v349
    %462 = vmatpush.bf16.msra.mxu0 %v348
    %463 = vmatpush.bf16.msra.mxu0 %v347
    %464 = vmatpush.bf16.msra.mxu0 %v346
    %465 = vmatmul.bf16.gmra.mxu0 %v123
    %v466 = vpop.f32.mrf.mxu0
    %v467 = vadd.f32 %v454, %v466
    %v468 = vpop.f32.mrf.mxu0
    %469 = vdwg.mxu0
    %470 = vmatpush.bf16.msra.mxu0 %v361
    %471 = vmatpush.bf16.msra.mxu0 %v360
    %472 = vmatpush.bf16.msra.mxu0 %v359
    %473 = vmatpush.bf16.msra.mxu0 %v358
    %474 = vmatpush.bf16.msra.mxu0 %v357
    %475 = vmatpush.bf16.msra.mxu0 %v356
    %476 = vmatpush.bf16.msra.mxu0 %v355
    %477 = vmatpush.bf16.msra.mxu0 %v354
    %478 = vmatmul.bf16.gmra.mxu0 %v124
    %v479 = vpop.f32.mrf.mxu0
    %v480 = vadd.f32 %v467, %v479
    %v481 = vpop.f32.mrf.mxu0
    %482 = vdwg.mxu0
    %483 = vmatpush.bf16.msra.mxu0 %v369
    %484 = vmatpush.bf16.msra.mxu0 %v368
    %485 = vmatpush.bf16.msra.mxu0 %v367
    %486 = vmatpush.bf16.msra.mxu0 %v366
    %487 = vmatpush.bf16.msra.mxu0 %v365
    %488 = vmatpush.bf16.msra.mxu0 %v364
    %489 = vmatpush.bf16.msra.mxu0 %v363
    %490 = vmatpush.bf16.msra.mxu0 %v362
    %491 = vmatmul.bf16.gmra.mxu0 %v125
    %v492 = vpop.f32.mrf.mxu0
    %v493 = vadd.f32 %v480, %v492
    %v494 = vpop.f32.mrf.mxu0
    %495 = vdwg.mxu0
    %496 = vmatpush.bf16.msra.mxu0 %v377
    %497 = vmatpush.bf16.msra.mxu0 %v376
    %498 = vmatpush.bf16.msra.mxu0 %v375
    %499 = vmatpush.bf16.msra.mxu0 %v374
    %500 = vmatpush.bf16.msra.mxu0 %v373
    %501 = vmatpush.bf16.msra.mxu0 %v372
    %502 = vmatpush.bf16.msra.mxu0 %v371
    %503 = vmatpush.bf16.msra.mxu0 %v370
    %504 = vmatmul.bf16.gmra.mxu0 %v126
    %v505 = vpop.f32.mrf.mxu0
    %v506 = vadd.f32 %v493, %v505
    %v507 = vpop.f32.mrf.mxu0
    %508 = vdwg.mxu0
    %509 = vmatpush.bf16.msra.mxu0 0
    %510 = vmatpush.bf16.msra.mxu0 0
    %511 = vmatpush.bf16.msra.mxu0 0
    %512 = vmatpush.bf16.msra.mxu0 0
    %513 = vmatpush.bf16.msra.mxu0 0
    %514 = vmatpush.bf16.msra.mxu0 0
    %515 = vmatpush.bf16.msra.mxu0 0
    %516 = vmatpush.bf16.msra.mxu0 %v378
    %517 = vmatmul.bf16.gmra.mxu0 %v429
    %v518 = vpop.f32.mrf.mxu0
    %v519 = vadd.f32 %v506, %v518
    %v520 = vpop.f32.mrf.mxu0
    %521 = vdwg.mxu0
    %v522 = vmax.f32 %v519, 0.0
    %vm523 = vcmask 74752
    %524 = vst.msk [vmem:[#allocation2] sm:$0x3] %vm523, %v522
    // Predicated region
    $region14: #{tpu_custom_call.1} parent=1 // pred_check
      _
    $region15: #{tpu_custom_call.1} parent=1 // pred_check_branch
      %526 = sbr.rel (0) target = $region17
    $region16: #{tpu_custom_call.1} parent=1 // pred_region
      %528 = vsyncadd [#allocation3], 0
      %s530 = sshll.u32 [#allocation2], 4
      %s531 = int_to_ptr.vmem [resolvable:$true] %s530
      %s532 = sshll.u32 %s3, 4
      %s533 = int_to_ptr.hbm [resolvable:$true] %s532
      %535 = dma.vmem_to_hbm [thread:$0]  %s531, 32, %s533, [#allocation3]
    $region17: #{tpu_custom_call.1} parent=1 // pred_fallthru
      _
    // Predicated region
    $region18: #{tpu_custom_call.1} parent=1 // pred_check
      _
    $region19: #{tpu_custom_call.1} parent=1 // pred_check_branch
      %537 = sbr.rel (0) target = $region21
    $region20: #{tpu_custom_call.1} parent=1 // pred_region
      %539 = dma.done [#allocation3], 32
    $region21: #{tpu_custom_call.1} parent=1 // pred_fallthru
      _
    %540 = vsyncpa [#allocation3], 1

</llo_original>
